<compile_context>
chip_gen: v6e
topology: v6e:2x2x1
jax: 0.10.0
libtpu: 0.0.40
codegen_flags: <defaults>
</compile_context>

<pallas_src>
import jax
import jax.numpy as jnp
from jax.experimental import pallas as pl
from jax.experimental.pallas import tpu as pltpu

ESP = 1e-12          # matches `esp = 1e-12` in the PyTorch module
_LANES = 128


def _mf_loss2_kernel(p_ref, g_ref, out_ref):
    # Upcast in-kernel so HBM/VMEM tiles stay in the (possibly narrow) input dtype.
    p = p_ref[...].astype(jnp.float32)          # [tb, N]
    g = g_ref[...].astype(jnp.float32)          # [tb, N]

    nz = g != 0.0                               # nonzero positions of g per row

    pg = p * g
    # (1-p)*(1-g) == 1 - p - g + p*g : reuses pg (one fewer multiply feeding EUP).
    loss_ij = 1.0 - (jnp.sqrt(pg + ESP) + jnp.sqrt((1.0 - p - g) + pg + ESP))
    # select (vsel) masked positions to exactly 0 so NaN from never-evaluated
    # positions cannot propagate (PyTorch semantics).
    loss_ij = jnp.where(nz, loss_ij, 0.0)
    cnt_ij = jnp.where(nz, 1.0, 0.0)

    row_sum = jnp.sum(loss_ij, axis=-1, keepdims=True)     # [tb, 1]
    row_cnt = jnp.sum(cnt_ij, axis=-1, keepdims=True)      # [tb, 1]

    # rows with no nonzero terms contribute 0 (PyTorch: loss stays 0, no divide)
    row_mean = jnp.where(row_cnt > 0.0, row_sum / jnp.maximum(row_cnt, 1.0), 0.0)

    # per-block partial sum of row means, broadcast across 128 lanes so the
    # store is a single unmasked lane-dense vst.
    partial = jnp.sum(row_mean)
    out_ref[...] = jnp.full(out_ref.shape, partial, dtype=jnp.float32)


def _round_up(x, m):
    return ((x + m - 1) // m) * m


def _sublane_pack(dtype):
    """Sublane packing of a dtype: 8 for 32-bit, 16 for bf16, 32 for int8/fp8."""
    return max(8, 32 // max(1, jnp.dtype(dtype).itemsize))


def _vmem_budget():
    """Generation-aware (per-input-tile bytes, scoped vmem_limit_bytes)."""
    try:
        cap = int(pltpu.get_tpu_info().vmem_capacity_bytes)
    except Exception:
        cap = 64 << 20  # conservative fallback: assume v7x-sized VMEM
    if cap >= (96 << 20):            # v5e / v6e: 128 MiB physical VMEM
        return 8 << 20, 64 << 20
    else:                            # v7x: 64 MiB physical VMEM per TC
        return 4 << 20, 40 << 20


def _choose_row_tile(n_cols, itemsize, sublane, max_tile_bytes):
    """Biggest sublane-aligned row tile whose PHYSICAL footprint fits the budget."""
    row_bytes = _round_up(n_cols, _LANES) * itemsize   # lane-padded row footprint
    tb = max_tile_bytes // max(1, row_bytes)
    tb = min(tb, 1 << 16)                              # sanity cap (64K rows)
    tb -= tb % sublane
    return max(tb, sublane)


def multi_fidelity_loss2(p, g, *, row_block=None):
    """Pallas implementation of Multi_Fidelity_Loss2.forward. Returns shape (1, 1)."""
    assert p.shape == g.shape and p.ndim == 2
    B, N = g.shape

    sub = max(_sublane_pack(p.dtype), _sublane_pack(g.dtype))
    max_tile_bytes, vmem_limit = _vmem_budget()

    if row_block is None:
        itemsize = max(jnp.dtype(p.dtype).itemsize, jnp.dtype(g.dtype).itemsize)
        tb = _choose_row_tile(N, itemsize, sub, max_tile_bytes)
        # Give v7x's second TensorCore work: aim for >= 2 (prefer 4) grid blocks.
        if B > sub:
            desired = 4 if B >= 4 * sub else 2
            per_block = _round_up(pl.cdiv(B, desired), sub)
            tb = min(tb, per_block)
    else:
        tb = max(sub, row_block - (row_block % sub))

    if B <= tb:
        # Single block covering all rows: block == full array dims, always legal.
        tb, b_pad = B, B
    else:
        b_pad = pl.cdiv(B, tb) * tb
        if b_pad != B:
            pad = b_pad - B
            # padded rows have g == 0 -> row count 0 -> contribute exactly 0
            p = jnp.pad(p, ((0, pad), (0, 0)))
            g = jnp.pad(g, ((0, pad), (0, 0)))

    num_blocks = b_pad // tb

    bytes_in = (b_pad * N * jnp.dtype(p.dtype).itemsize
                + b_pad * N * jnp.dtype(g.dtype).itemsize)
    cost = pl.CostEstimate(
        flops=10 * b_pad * N,
        transcendentals=2 * b_pad * N,
        bytes_accessed=bytes_in + num_blocks * _LANES * 4,
    )

    partials = pl.pallas_call(
        _mf_loss2_kernel,
        out_shape=jax.ShapeDtypeStruct((1, num_blocks * _LANES), jnp.float32),
        grid_spec=pltpu.PrefetchScalarGridSpec(
            num_scalar_prefetch=0,
            grid=(num_blocks,),
            in_specs=[
                pl.BlockSpec((tb, N), lambda i: (i, 0)),
                pl.BlockSpec((tb, N), lambda i: (i, 0)),
            ],
            out_specs=pl.BlockSpec((1, _LANES), lambda i: (0, i)),
        ),
        compiler_params=pltpu.CompilerParams(
            dimension_semantics=("parallel",),   # blocks are independent partials
            vmem_limit_bytes=vmem_limit,
        ),
        cost_estimate=cost,
    )(p, g)

    # Tiny final reduce on the host-side XLA graph: lane 0 of each block's slab.
    block_partials = partials.reshape(num_blocks, _LANES)[:, 0]
    total = jnp.sum(block_partials) / jnp.float32(B)
    return total.reshape(1, 1)


def _reference(p, g):
    # pure-JAX reference mirroring the PyTorch loops
    p = p.astype(jnp.float32)
    g = g.astype(jnp.float32)
    nz = g != 0.0
    loss_ij = 1.0 - (jnp.sqrt(p * g + ESP) + jnp.sqrt((1.0 - p) * (1.0 - g) + ESP))
    loss_ij = jnp.where(nz, loss_ij, 0.0)
    row_sum = jnp.sum(loss_ij, axis=-1)
    row_cnt = jnp.sum(nz.astype(jnp.float32), axis=-1)
    row_mean = jnp.where(row_cnt > 0, row_sum / jnp.maximum(row_cnt, 1.0), 0.0)
    return (jnp.sum(row_mean) / g.shape[0]).reshape(1, 1)


def _make_inputs(key, B, N, dtype=jnp.float32, keep_prob=0.4):
    kp, kg, km = jax.random.split(key, 3)
    p = jax.random.uniform(kp, (B, N), dtype=jnp.float32, minval=0.01, maxval=0.99)
    g_vals = jax.random.uniform(kg, (B, N), dtype=jnp.float32, minval=0.1, maxval=1.0)
    keep = jax.random.bernoulli(km, p=keep_prob, shape=(B, N))
    g = jnp.where(keep, g_vals, 0.0)
    return p.astype(dtype), g.astype(dtype)


if __name__ == "__main__":
    root = jax.random.PRNGKey(0)
    k1, k2, k3, k4 = jax.random.split(root, 4)

    # 1) Small shape consistent with the module: batch=2, classes=16 (single block).
    p1, g1 = _make_inputs(k1, 2, 16)
    out1 = jax.block_until_ready(multi_fidelity_loss2(p1, g1))
    ref1 = _reference(p1, g1)
    assert out1.shape == (1, 1)
    assert jnp.allclose(out1, ref1, atol=1e-5, rtol=1e-5), (out1, ref1)

    # 2) Explicit small row_block: multi-block grid + padded batch path.
    p2, g2 = _make_inputs(k2, 20, 128, keep_prob=0.3)
    out2 = jax.block_until_ready(multi_fidelity_loss2(p2, g2, row_block=8))
    ref2 = _reference(p2, g2)
    assert jnp.allclose(out2, ref2, atol=1e-5, rtol=1e-5), (out2, ref2)

    # 3) N not a multiple of 128, default (auto) tiling: >=2 blocks + batch padding.
    p3, g3 = _make_inputs(k3, 50, 100, keep_prob=0.5)
    out3 = jax.block_until_ready(multi_fidelity_loss2(p3, g3))
    ref3 = _reference(p3, g3)
    assert jnp.allclose(out3, ref3, atol=1e-5, rtol=1e-5), (out3, ref3)

    # 4) bf16 inputs: exercises 16-row sublane-aligned tiles + in-kernel upcast.
    p4, g4 = _make_inputs(k4, 40, 96, dtype=jnp.bfloat16, keep_prob=0.35)
    out4 = jax.block_until_ready(multi_fidelity_loss2(p4, g4))
    ref4 = _reference(p4, g4)
    assert jnp.allclose(out4, ref4, atol=1e-4, rtol=1e-4), (out4, ref4)

    print("KERNEL_OK")
</pallas_src>

<mosaic_0001>
module attributes {stable_mosaic.version = 11 : i64} {
  func.func @_mf_loss2_kernel(%arg0: i32, %arg1: memref<2x16xf32, #tpu.memory_space<vmem>>, %arg2: memref<2x16xf32, #tpu.memory_space<vmem>>, %arg3: memref<1x128xf32, #tpu.memory_space<vmem>>) attributes {dimension_semantics = [#tpu.dimension_semantics<parallel>], iteration_bounds = array<i64: 1>, scalar_prefetch = 0 : i64, scratch_operands = 0 : i64, tpu.core_type = #tpu.core_type<tc>, window_params = [{transform_indices = @transform_0, window_bounds = array<i64: 2, 16>}, {transform_indices = @transform_1, window_bounds = array<i64: 2, 16>}, {transform_indices = @transform_2, window_bounds = array<i64: 1, 128>}]} {
    %c0 = arith.constant 0 : index
    %c0_0 = arith.constant 0 : index
    %0 = vector.load %arg1[%c0, %c0_0] : memref<2x16xf32, #tpu.memory_space<vmem>>, vector<2x16xf32>
    %c0_1 = arith.constant 0 : index
    %c0_2 = arith.constant 0 : index
    %1 = vector.load %arg2[%c0_1, %c0_2] : memref<2x16xf32, #tpu.memory_space<vmem>>, vector<2x16xf32>
    %cst = arith.constant 0.000000e+00 : f32
    %2 = vector.broadcast %cst : f32 to vector<2x16xf32>
    %3 = arith.cmpf one, %1, %2 : vector<2x16xf32>
    %4 = arith.mulf %0, %1 : vector<2x16xf32>
    %cst_3 = arith.constant 9.99999996E-13 : f32
    %5 = vector.broadcast %cst_3 : f32 to vector<2x16xf32>
    %6 = arith.addf %4, %5 : vector<2x16xf32>
    %7 = math.sqrt %6 : vector<2x16xf32>
    %cst_4 = arith.constant 1.000000e+00 : f32
    %8 = vector.broadcast %cst_4 : f32 to vector<2x16xf32>
    %9 = arith.subf %8, %0 : vector<2x16xf32>
    %10 = arith.subf %9, %1 : vector<2x16xf32>
    %11 = arith.addf %10, %4 : vector<2x16xf32>
    %cst_5 = arith.constant 9.99999996E-13 : f32
    %12 = vector.broadcast %cst_5 : f32 to vector<2x16xf32>
    %13 = arith.addf %11, %12 : vector<2x16xf32>
    %14 = math.sqrt %13 : vector<2x16xf32>
    %15 = arith.addf %7, %14 : vector<2x16xf32>
    %cst_6 = arith.constant 1.000000e+00 : f32
    %16 = vector.broadcast %cst_6 : f32 to vector<2x16xf32>
    %17 = arith.subf %16, %15 : vector<2x16xf32>
    %cst_7 = arith.constant 0.000000e+00 : f32
    %18 = vector.broadcast %cst_7 : f32 to vector<2x16xf32>
    %19 = arith.select %3, %17, %18 : vector<2x16xi1>, vector<2x16xf32>
    %cst_8 = arith.constant 1.000000e+00 : f32
    %cst_9 = arith.constant 0.000000e+00 : f32
    %20 = vector.broadcast %cst_8 : f32 to vector<2x16xf32>
    %21 = vector.broadcast %cst_9 : f32 to vector<2x16xf32>
    %22 = arith.select %3, %20, %21 : vector<2x16xi1>, vector<2x16xf32>
    %cst_10 = arith.constant dense<0.000000e+00> : vector<2xf32>
    %23 = vector.multi_reduction <add>, %19, %cst_10 [1] : vector<2x16xf32> to vector<2xf32>
    %24 = vector.shape_cast %23 : vector<2xf32> to vector<2x1xf32>
    %cst_11 = arith.constant dense<0.000000e+00> : vector<2xf32>
    %25 = vector.multi_reduction <add>, %22, %cst_11 [1] : vector<2x16xf32> to vector<2xf32>
    %26 = vector.shape_cast %25 : vector<2xf32> to vector<2x1xf32>
    %cst_12 = arith.constant 0.000000e+00 : f32
    %27 = vector.broadcast %cst_12 : f32 to vector<2x1xf32>
    %28 = arith.cmpf ogt, %26, %27 : vector<2x1xf32>
    %cst_13 = arith.constant 1.000000e+00 : f32
    %29 = vector.broadcast %cst_13 : f32 to vector<2x1xf32>
    %30 = arith.maximumf %26, %29 : vector<2x1xf32>
    %31 = arith.divf %24, %30 : vector<2x1xf32>
    %cst_14 = arith.constant 0.000000e+00 : f32
    %32 = vector.broadcast %cst_14 : f32 to vector<2x1xf32>
    %33 = arith.select %28, %31, %32 : vector<2x1xi1>, vector<2x1xf32>
    %34 = vector.shape_cast %33 : vector<2x1xf32> to vector<1x2x1xf32>
    %cst_15 = arith.constant dense<0.000000e+00> : vector<1xf32>
    %35 = vector.multi_reduction <add>, %34, %cst_15 [1, 2] : vector<1x2x1xf32> to vector<1xf32>
    %36 = vector.shape_cast %35 : vector<1xf32> to vector<1x1x1xf32>
    %37 = vector.extract %36[0, 0, 0] : f32 from vector<1x1x1xf32>
    %38 = vector.broadcast %37 : f32 to vector<1x128xf32>
    %c0_16 = arith.constant 0 : index
    %c0_17 = arith.constant 0 : index
    %39 = vector.load %arg3[%c0_16, %c0_17] : memref<1x128xf32, #tpu.memory_space<vmem>>, vector<1x128xf32>
    tpu.vector_store %arg3[%c0_16, %c0_17], %38 {strides = array<i32>} : memref<1x128xf32, #tpu.memory_space<vmem>>, vector<1x128xf32>,
    return
  }
  func.func @transform_0(%arg0: i32) -> (i32, i32) {
    %c0_i32 = arith.constant 0 : i32
    %c0_i32_0 = arith.constant 0 : i32
    return %arg0, %c0_i32 : i32, i32
  }
  func.func @transform_1(%arg0: i32) -> (i32, i32) {
    %c0_i32 = arith.constant 0 : i32
    %c0_i32_0 = arith.constant 0 : i32
    return %arg0, %c0_i32 : i32, i32
  }
  func.func @transform_2(%arg0: i32) -> (i32, i32) {
    %c0_i32 = arith.constant 0 : i32
    %c0_i32_0 = arith.constant 0 : i32
    return %c0_i32, %arg0 : i32, i32
  }
}

</mosaic_0001>

<llo_original>
// kernel: tpu_custom_call.1
$region0: #{tpu_custom_call.1}
  #allocation0 [shape = 'u32[]', space=smem, size = 0x4, offset = 0x4, fixed_abs, tag = 'smem constant byte address 0x4 - core index']
  #allocation1 [shape = 'u32[144,128]{1,0:T(1,128)}', space=vmem, size = 0x12000, scoped, tag = 'internal scratch']
  %s0 = inlined_call_operand.hbm [shape: f32[2,16], index: 0, kind: input, shape index: {}]
  %s1 = inlined_call_operand.hbm [shape: f32[2,16], index: 1, kind: input, shape index: {}]
  %s2 = inlined_call_operand.hbm [shape: f32[1,128], index: 2, kind: output, shape index: {}]
  %s3 = sld [smem:[#allocation0]]
  $region26: #{tpu_custom_call.1} parent=0
    _
  %s5 = ssub.s32 1, %s3
  %s6 = scalar_select 0, %s5, %s3
  $region1: #{tpu_custom_call.1} parent=0
    #allocation2 [shape = 'u8[1024]{0}', space=vmem, size = 0x400, scoped, tag = 'input window, operand 0, single buffered']
    #allocation3 [shape = 's32[1]{0}', space=sflag, size = 0x4, scoped, tag = 'scoped memory for tpu_custom_call.1']
    #allocation4 [shape = 's32[1]{0}', space=sflag, size = 0x4, scoped, tag = 'scoped memory for tpu_custom_call.1']
    #allocation5 [shape = 'u8[1024]{0}', space=vmem, size = 0x400, scoped, tag = 'input window, operand 1, single buffered']
    #allocation6 [shape = 's32[1]{0}', space=sflag, size = 0x4, scoped, tag = 'scoped memory for tpu_custom_call.1']
    #allocation7 [shape = 'u8[512]{0}', space=vmem, size = 0x400, scoped, tag = 'output window, operand 0, single buffered']
    %7 = vsyncpa [#allocation3], 0
    %8 = vsyncpa [#allocation6], 0
    %9 = vsyncpa [#allocation4], 0
    // Predicated region
    $region2: #{tpu_custom_call.1} parent=1 // pred_check
      _
    $region3: #{tpu_custom_call.1} parent=1 // pred_check_branch
      %11 = sbr.rel (0) target = $region5
    $region4: #{tpu_custom_call.1} parent=1 // pred_region
      %s13 = ssub.s32 32, 32
      %14 = vsyncadd [#allocation3], %s13
      %s16 = sshll.u32 [#allocation2], 4
      %s17 = int_to_ptr.vmem [resolvable:$true] %s16
      %19 = dma.hbm_to_vmem [thread:$0]  %s0, 32, %s17, [#allocation3]
    $region5: #{tpu_custom_call.1} parent=1 // pred_fallthru
      _
    // Predicated region
    $region6: #{tpu_custom_call.1} parent=1 // pred_check
      _
    $region7: #{tpu_custom_call.1} parent=1 // pred_check_branch
      %21 = sbr.rel (0) target = $region9
    $region8: #{tpu_custom_call.1} parent=1 // pred_region
      %s23 = ssub.s32 32, 32
      %24 = vsyncadd [#allocation6], %s23
      %s26 = sshll.u32 [#allocation5], 4
      %s27 = int_to_ptr.vmem [resolvable:$true] %s26
      %29 = dma.hbm_to_vmem [thread:$0]  %s1, 32, %s27, [#allocation6]
    $region9: #{tpu_custom_call.1} parent=1 // pred_fallthru
      _
    // Predicated region
    $region10: #{tpu_custom_call.1} parent=1 // pred_check
      _
    $region11: #{tpu_custom_call.1} parent=1 // pred_check_branch
      %31 = sbr.rel (0) target = $region13
    $region12: #{tpu_custom_call.1} parent=1 // pred_region
      %32 = dma.done [#allocation3], 32
    $region13: #{tpu_custom_call.1} parent=1 // pred_fallthru
      _
    // Predicated region
    $region14: #{tpu_custom_call.1} parent=1 // pred_check
      _
    $region15: #{tpu_custom_call.1} parent=1 // pred_check_branch
      %34 = sbr.rel (0) target = $region17
    $region16: #{tpu_custom_call.1} parent=1 // pred_region
      %35 = dma.done [#allocation6], 32
    $region17: #{tpu_custom_call.1} parent=1 // pred_fallthru
      _
    %v36 = vld [vmem:[#allocation2] sm:$0x3]
    %v37 = vld [vmem:[#allocation5] sm:$0x3]
    %vm38 = vcmp.ne.f32.partialorder %v37, 0.0
    %v39 = vmul.f32 %v36, %v37
    %v40 = vadd.f32 %v39, 1e-12
    %v41 = vrsqrt.pop %v40
    %v42 = vmul.f32 %v40, %v41
    %vm43 = vcmp.eq.f32.partialorder %v40, inf
    %v44 = vsel %vm43, %v40, %v42
    %vm45 = vcmp.eq.f32.partialorder %v40, 0.0
    %v46 = vand.u32 %v40, 2147483648
    %v47 = vsel %vm45, %v46, %v44
    %v48 = vsub.f32 1.0, %v36
    %v49 = vsub.f32 %v48, %v37
    %v50 = vadd.f32 %v49, %v39
    %v51 = vadd.f32 %v50, 1e-12
    %v52 = vrsqrt.pop %v51
    %v53 = vmul.f32 %v51, %v52
    %vm54 = vcmp.eq.f32.partialorder %v51, inf
    %v55 = vsel %vm54, %v51, %v53
    %vm56 = vcmp.eq.f32.partialorder %v51, 0.0
    %v57 = vand.u32 %v51, 2147483648
    %v58 = vsel %vm56, %v57, %v55
    %v59 = vadd.f32 %v47, %v58
    %v60 = vsub.f32 1.0, %v59
    %v61 = vsel %vm38, %v60, 0.0
    %v62 = vsel %vm38, 1.0, 0.0
    %vm63 = vcmask 123904
    %v64 = vsel %vm63, %v61, 0.0
    %65 = vadd.xlane.f32.xlu0 %v64
    %v66 = vpop.xlane.xlu0 %65
    %v67 = vsel %vm63, %v62, 0.0
    %68 = vadd.xlane.f32.xlu0 %v67
    %v69 = vpop.xlane.xlu0 %68
    %vm70 = vcmp.gt.f32.partialorder %v69, 0.0
    %v71 = vmax.f32 %v69, 1.0
    %v72 = vrcp.pop %v71
    %v73 = vmul.f32 %v66, %v72
    %v74 = vsel %vm70, %v73, 0.0
    %vm75 = vcmask 1024
    %v76 = vsel %vm75, %v74, 0.0
    %77 = vadd.xlane.f32.xlu0 %v76
    %v78 = vpop.xlane.xlu0 %77
    %v79 = vrot.slane %v78, 4
    %v80 = vadd.f32 %v78, %v79
    %v81 = vrot.slane %v80, 2
    %v82 = vadd.f32 %v80, %v81
    %v83 = vrot.slane %v82, 1
    %v84 = vadd.f32 %v82, %v83
    %s85 = vtos %v84
    %v86 = vstv %s85
    %87 = vst [vmem:[#allocation7] sm:$0x1] %v86
    // Predicated region
    $region18: #{tpu_custom_call.1} parent=1 // pred_check
      _
    $region19: #{tpu_custom_call.1} parent=1 // pred_check_branch
      %89 = sbr.rel (0) target = $region21
    $region20: #{tpu_custom_call.1} parent=1 // pred_region
      %s91 = ssub.s32 16, 16
      %92 = vsyncadd [#allocation4], %s91
      %s94 = sshll.u32 [#allocation7], 4
      %s95 = int_to_ptr.vmem [resolvable:$true] %s94
      %97 = dma.vmem_to_hbm [thread:$0]  %s95, 16, %s2, [#allocation4]
    $region21: #{tpu_custom_call.1} parent=1 // pred_fallthru
      _
    // Predicated region
    $region22: #{tpu_custom_call.1} parent=1 // pred_check
      _
    $region23: #{tpu_custom_call.1} parent=1 // pred_check_branch
      %99 = sbr.rel (0) target = $region25
    $region24: #{tpu_custom_call.1} parent=1 // pred_region
      %100 = dma.done [#allocation4], 16
    $region25: #{tpu_custom_call.1} parent=1 // pred_fallthru
      _
    %101 = vsyncpa [#allocation3], 1
    %102 = vsyncpa [#allocation6], 1
    %103 = vsyncpa [#allocation4], 1

</llo_original>
